<compile_context>
chip_gen: v7x
topology: tpu7x:2x2x1
jax: 0.10.0
libtpu: 0.0.40
codegen_flags: <defaults>
</compile_context>

<pallas_src>
import functools

import jax
import jax.numpy as jnp
import numpy as np
from jax import lax
from jax.experimental import pallas as pl
from jax.experimental.pallas import tpu as pltpu

LANE = 128


# ------------------------------ helpers ----------------------------------- #
def _round_up(x, m):
    return (x + m - 1) // m * m


def _vmem_budget_bytes():
    """Conservative per-kernel VMEM budget, derived per TPU generation."""
    cap = 64 * 1024 * 1024  # v7x worst case (64 MiB physical per TC)
    try:
        cap = int(getattr(pltpu.get_tpu_info(), "vmem_capacity_bytes", cap))
    except Exception:
        pass
    # Stay well under the scoped-VMEM defaults (16 MiB v5e / 32 MiB v6e, v7x).
    return min(cap // 4, 24 * 1024 * 1024)


def _pick_tile_m(m, k, cout_pad):
    """Largest M-tile (rows) that fits the VMEM budget with double buffering."""
    budget = _vmem_budget_bytes()
    resident = k * cout_pad * 2 + cout_pad * 4            # bf16 weights + f32 bias
    per_row = 2 * (k * 2) + 2 * (cout_pad * 4)            # 2x bf16 patch row + 2x f32 out row
    tm = (budget - resident) // per_row
    tm = max(8, min(int(tm), 1024, _round_up(m, 8)))
    if tm >= LANE:
        tm = tm // LANE * LANE                            # 128-aligned (MXU / v5e friendly)
    else:
        tm = tm // 8 * 8
    return max(tm, 8)


# ----------------------------- Pallas kernel ------------------------------ #
def _conv_matmul_kernel(p_ref, w_ref, b_ref, o_ref):
    # p_ref: (TM, K)        bf16 im2col patch tile
    # w_ref: (K, COUT_PAD)  bf16 flattened weights (resident across the grid)
    # b_ref: (1, COUT_PAD)  f32 bias (resident)
    acc = jnp.dot(p_ref[...], w_ref[...], preferred_element_type=jnp.float32)
    o_ref[...] = (acc + b_ref[...]).astype(o_ref.dtype)


def conv_matmul(patches, w_flat, bias_row, tile_m):
    m_pad, k = patches.shape
    _, cout_pad = w_flat.shape
    grid = (m_pad // tile_m,)
    cost = pl.CostEstimate(
        flops=2 * m_pad * k * cout_pad,
        transcendentals=0,
        bytes_accessed=(patches.size * patches.dtype.itemsize
                        + w_flat.size * w_flat.dtype.itemsize
                        + bias_row.size * bias_row.dtype.itemsize
                        + m_pad * cout_pad * 4),
    )
    return pl.pallas_call(
        _conv_matmul_kernel,
        out_shape=jax.ShapeDtypeStruct((m_pad, cout_pad), jnp.float32),
        grid=grid,
        in_specs=[
            pl.BlockSpec((tile_m, k), lambda i: (i, 0)),
            pl.BlockSpec((k, cout_pad), lambda i: (0, 0)),
            pl.BlockSpec((1, cout_pad), lambda i: (0, 0)),
        ],
        out_specs=pl.BlockSpec((tile_m, cout_pad), lambda i: (i, 0)),
        compiler_params=pltpu.CompilerParams(
            dimension_semantics=("parallel",),
            vmem_limit_bytes=32 * 1024 * 1024,
        ),
        cost_estimate=cost,
    )(patches, w_flat, bias_row)


# ------------------------------ ConvLayer --------------------------------- #
def _im2col_nhwc(xp, k, stride):
    # xp: (N, Hp, Wp, C) padded input -> (N*Ho*Wo, k*k*C), feature order (kh, kw, c)
    n, hp, wp, c = xp.shape
    ho = (hp - k) // stride + 1
    wo = (wp - k) // stride + 1
    cols = []
    for kh in range(k):
        for kw in range(k):
            cols.append(xp[:, kh:kh + (ho - 1) * stride + 1:stride,
                              kw:kw + (wo - 1) * stride + 1:stride, :])
    patches = jnp.stack(cols, axis=3)                     # (N, Ho, Wo, k*k, C)
    return patches.reshape(n * ho * wo, k * k * c), ho, wo


@functools.partial(jax.jit, static_argnames=("kernel_size", "stride"))
def conv_layer_forward(x, weight, bias, kernel_size, stride):
    """ConvLayer.forward: ReflectionPad2d(k // 2) followed by Conv2d(k, stride).

    x:      (N, C_in, H, W)      (PyTorch NCHW)
    weight: (C_out, C_in, k, k)  (PyTorch OIHW)
    bias:   (C_out,)
    """
    k = kernel_size
    pad = k // 2
    n, _, _, _ = x.shape
    cout = weight.shape[0]

    # NHWC internally: avoids the big (C, kh, kw) transpose on the patches path.
    x_nhwc = jnp.transpose(x, (0, 2, 3, 1))
    if pad > 0:
        x_nhwc = jnp.pad(x_nhwc, ((0, 0), (pad, pad), (pad, pad), (0, 0)),
                         mode="reflect")

    patches, ho, wo = _im2col_nhwc(x_nhwc, k, stride)     # (M, K) f32
    m, kk = patches.shape
    cout_pad = _round_up(cout, LANE)

    # Flatten weights to HWIO order -> rows match the (kh, kw, c) patch
    # features; zero-pad Cout up to a lane-dense multiple of 128.
    w_flat = jnp.transpose(weight, (2, 3, 1, 0)).reshape(kk, cout)
    w_flat = jnp.pad(w_flat, ((0, 0), (0, cout_pad - cout)))
    bias_row = jnp.pad(bias, (0, cout_pad - cout)).reshape(1, cout_pad)

    tile_m = _pick_tile_m(m, kk, cout_pad)
    m_pad = _round_up(m, tile_m)
    patches = jnp.pad(patches, ((0, m_pad - m), (0, 0)))

    # bf16 inputs, f32 MXU accumulation inside the kernel.
    out = conv_matmul(patches.astype(jnp.bfloat16),
                      w_flat.astype(jnp.bfloat16),
                      bias_row.astype(jnp.float32),
                      tile_m)                             # (M_pad, COUT_PAD) f32

    out = out[:m, :cout].reshape(n, ho, wo, cout)
    return jnp.transpose(out, (0, 3, 1, 2))               # back to NCHW


# --------------------------------- main ------------------------------------ #
if __name__ == "__main__":
    batch, in_channels, out_channels = 2, 4, 8
    kernel_size, stride = 3, 2
    H = W = 16

    key = jax.random.PRNGKey(0)
    kx, kw, kb = jax.random.split(key, 3)

    x = jax.random.normal(kx, (batch, in_channels, H, W), dtype=jnp.float32)
    fan_in = in_channels * kernel_size * kernel_size
    bound = 1.0 / np.sqrt(fan_in)
    weight = jax.random.uniform(
        kw, (out_channels, in_channels, kernel_size, kernel_size),
        minval=-bound, maxval=bound, dtype=jnp.float32)
    bias = jax.random.uniform(
        kb, (out_channels,), minval=-bound, maxval=bound, dtype=jnp.float32)

    out = conv_layer_forward(x, weight, bias, kernel_size, stride)
    out = jax.block_until_ready(out)

    # Reference: XLA conv on the same bf16-rounded operands, f32 accumulation.
    pad = kernel_size // 2
    xp = jnp.pad(x, ((0, 0), (0, 0), (pad, pad), (pad, pad)), mode="reflect")
    ref = lax.conv_general_dilated(
        xp.astype(jnp.bfloat16), weight.astype(jnp.bfloat16),
        window_strides=(stride, stride), padding="VALID",
        dimension_numbers=("NCHW", "OIHW", "NCHW"),
        preferred_element_type=jnp.float32) + bias[None, :, None, None]
    np.testing.assert_allclose(np.asarray(out), np.asarray(ref),
                               rtol=1e-3, atol=1e-3)

    print("KERNEL_OK")
</pallas_src>

<mosaic_0001>
module attributes {stable_mosaic.version = 11 : i64} {
  func.func @_conv_matmul_kernel(%arg0: i32, %arg1: memref<128x36xbf16, #tpu.memory_space<vmem>>, %arg2: memref<36x128xbf16, #tpu.memory_space<vmem>>, %arg3: memref<1x128xf32, #tpu.memory_space<vmem>>, %arg4: memref<128x128xf32, #tpu.memory_space<vmem>>) attributes {dimension_semantics = [#tpu.dimension_semantics<parallel>], iteration_bounds = array<i64: 1>, scalar_prefetch = 0 : i64, scratch_operands = 0 : i64, tpu.core_type = #tpu.core_type<tc>, window_params = [{transform_indices = @transform_0, window_bounds = array<i64: 128, 36>}, {pipeline_mode = #tpu.pipeline_mode<synchronous>, transform_indices = @transform_1, window_bounds = array<i64: 36, 128>}, {pipeline_mode = #tpu.pipeline_mode<synchronous>, transform_indices = @transform_2, window_bounds = array<i64: 1, 128>}, {transform_indices = @transform_3, window_bounds = array<i64: 128, 128>}]} {
    %c0 = arith.constant 0 : index
    %c0_0 = arith.constant 0 : index
    %0 = vector.load %arg1[%c0, %c0_0] : memref<128x36xbf16, #tpu.memory_space<vmem>>, vector<128x36xbf16>
    %c0_1 = arith.constant 0 : index
    %c0_2 = arith.constant 0 : index
    %1 = vector.load %arg2[%c0_1, %c0_2] : memref<36x128xbf16, #tpu.memory_space<vmem>>, vector<36x128xbf16>
    %cst = arith.constant dense<0.000000e+00> : vector<128x128xf32>
    %2 = tpu.matmul %0, %1, %cst {dimension_numbers = #tpu.dot_dimension_numbers<[1], [0], [0], [1], [0, 0, 1, 1], [], []>} : vector<128x36xbf16>, vector<36x128xbf16>, vector<128x128xf32> -> vector<128x128xf32>
    %c0_3 = arith.constant 0 : index
    %c0_4 = arith.constant 0 : index
    %3 = vector.load %arg3[%c0_3, %c0_4] : memref<1x128xf32, #tpu.memory_space<vmem>>, vector<1x128xf32>
    %4 = vector.broadcast %3 : vector<1x128xf32> to vector<128x128xf32>
    %5 = arith.addf %2, %4 : vector<128x128xf32>
    %c0_5 = arith.constant 0 : index
    %c0_6 = arith.constant 0 : index
    %6 = vector.load %arg4[%c0_5, %c0_6] : memref<128x128xf32, #tpu.memory_space<vmem>>, vector<128x128xf32>
    tpu.vector_store %arg4[%c0_5, %c0_6], %5 {strides = array<i32>} : memref<128x128xf32, #tpu.memory_space<vmem>>, vector<128x128xf32>,
    return
  }
  func.func @transform_0(%arg0: i32) -> (i32, i32) {
    %c0_i32 = arith.constant 0 : i32
    %c0_i32_0 = arith.constant 0 : i32
    return %arg0, %c0_i32 : i32, i32
  }
  func.func @transform_1(%arg0: i32) -> (i32, i32) {
    %c0_i32 = arith.constant 0 : i32
    %c0_i32_0 = arith.constant 0 : i32
    %c0_i32_1 = arith.constant 0 : i32
    return %c0_i32, %c0_i32_0 : i32, i32
  }
  func.func @transform_2(%arg0: i32) -> (i32, i32) {
    %c0_i32 = arith.constant 0 : i32
    %c0_i32_0 = arith.constant 0 : i32
    %c0_i32_1 = arith.constant 0 : i32
    return %c0_i32, %c0_i32_0 : i32, i32
  }
  func.func @transform_3(%arg0: i32) -> (i32, i32) {
    %c0_i32 = arith.constant 0 : i32
    %c0_i32_0 = arith.constant 0 : i32
    return %arg0, %c0_i32 : i32, i32
  }
}

</mosaic_0001>

<llo_original>
// kernel: conv_layer_forward.1
$region0: #{conv_layer_forward.1}
  #allocation0 [shape = 'u32[]', space=smem, size = 0x4, offset = 0x4, fixed_abs, tag = 'smem constant byte address 0x4 - core index']
  #allocation1 [shape = 'u32[144,128]{1,0:T(1,128)}', space=vmem, size = 0x12000, scoped, tag = 'internal scratch']
  %s0 = inlined_call_operand.vmem [shape: bf16[128,36], index: 0, kind: input, shape index: {}]
  %s1 = inlined_call_operand.vmem [shape: bf16[36,128], index: 1, kind: input, shape index: {}]
  %s2 = inlined_call_operand.vmem [shape: f32[1,128], index: 2, kind: input, shape index: {}]
  %s3 = inlined_call_operand.vmem [shape: f32[128,128], index: 3, kind: output, shape index: {}]
  %s4 = sld [smem:[#allocation0]]
  $region22: #{conv_layer_forward.1} parent=0
    _
  %s6 = ssub.s32 1, %s4
  %s7 = scalar_select 0, %s6, %s4
  // Predicated region
  $region2: #{conv_layer_forward.1} parent=0 // pred_check
    _
  $region3: #{conv_layer_forward.1} parent=0 // pred_check_branch
    %9 = sbr.rel (0) target = $region5
  $region4: #{conv_layer_forward.1} parent=0 // pred_region
    _
  $region5: #{conv_layer_forward.1} parent=0 // pred_fallthru
    _
  // Predicated region
  $region6: #{conv_layer_forward.1} parent=0 // pred_check
    _
  $region7: #{conv_layer_forward.1} parent=0 // pred_check_branch
    %11 = sbr.rel (0) target = $region9
  $region8: #{conv_layer_forward.1} parent=0 // pred_region
    _
  $region9: #{conv_layer_forward.1} parent=0 // pred_fallthru
    _
  // Predicated region
  $region10: #{conv_layer_forward.1} parent=0 // pred_check
    _
  $region11: #{conv_layer_forward.1} parent=0 // pred_check_branch
    %13 = sbr.rel (0) target = $region13
  $region12: #{conv_layer_forward.1} parent=0 // pred_region
    _
  $region13: #{conv_layer_forward.1} parent=0 // pred_fallthru
    _
  %v15 = vld [vmem:[%s0] sm:$0xf]
  %v16 = vld [vmem:[%s0 + $0x4] sm:$0xf]
  %v17 = vld [vmem:[%s0 + $0x8] sm:$0xf]
  %v18 = vld [vmem:[%s0 + $0xc] sm:$0xf]
  %v19 = vld [vmem:[%s0 + $0x10] sm:$0xf]
  %v20 = vld [vmem:[%s0 + $0x14] sm:$0xf]
  %v21 = vld [vmem:[%s0 + $0x18] sm:$0xf]
  %v22 = vld [vmem:[%s0 + $0x1c] sm:$0xf]
  %v23 = vld [vmem:[%s0 + $0x20] sm:$0xf]
  %v24 = vld [vmem:[%s0 + $0x24] sm:$0xf]
  %v25 = vld [vmem:[%s0 + $0x28] sm:$0xf]
  %v26 = vld [vmem:[%s0 + $0x2c] sm:$0xf]
  %v27 = vld [vmem:[%s0 + $0x30] sm:$0xf]
  %v28 = vld [vmem:[%s0 + $0x34] sm:$0xf]
  %v29 = vld [vmem:[%s0 + $0x38] sm:$0xf]
  %v30 = vld [vmem:[%s0 + $0x3c] sm:$0xf]
  %v31 = vld [vmem:[%s1] sm:$0xf]
  %v32 = vld [vmem:[%s1 + $0x4] sm:$0xf]
  %v33 = vld [vmem:[%s1 + $0x8] sm:$0xf]
  %v34 = vld [vmem:[%s1 + $0xc] sm:$0xf]
  %v35 = vld [vmem:[%s1 + $0x10] sm:$0x3]
  %v36 = vld [vmem:[%s2] sm:$0x1]
  %v38 = vlaneseq
  %v39 = vshrl.u32 %v38, 7
  %v40 = vsub.s32 0, %v39
  %v41 = vrot.slane %v36, %v40
  %v59 = vunpack.c.l.b16 %v15
  %v60 = vunpack.c.l.b16 %v16
  %v61 = vunpack.c.l.b16 %v17
  %v62 = vunpack.c.l.b16 %v18
  %v63 = vunpack.c.l.b16 %v19
  %v64 = vunpack.c.l.b16 %v20
  %v65 = vunpack.c.l.b16 %v21
  %v66 = vunpack.c.l.b16 %v22
  %v67 = vunpack.c.l.b16 %v23
  %v68 = vunpack.c.l.b16 %v24
  %v69 = vunpack.c.l.b16 %v25
  %v70 = vunpack.c.l.b16 %v26
  %v71 = vunpack.c.l.b16 %v27
  %v72 = vunpack.c.l.b16 %v28
  %v73 = vunpack.c.l.b16 %v29
  %v74 = vunpack.c.l.b16 %v30
  %v75 = vpack.c.b16 %v60, %v59
  %v76 = vpack.c.b16 %v62, %v61
  %v77 = vpack.c.b16 %v64, %v63
  %v78 = vpack.c.b16 %v66, %v65
  %v79 = vpack.c.b16 %v68, %v67
  %v80 = vpack.c.b16 %v70, %v69
  %v81 = vpack.c.b16 %v72, %v71
  %v82 = vpack.c.b16 %v74, %v73
  %v88 = vunpack.c.l.b16 %v31
  %v89 = vunpack.c.l.b16 %v32
  %v90 = vunpack.c.l.b16 %v33
  %v91 = vunpack.c.l.b16 %v34
  %v92 = vunpack.c.l.b16 %v35
  %v93 = vpack.c.b16 %v89, %v88
  %v94 = vpack.c.b16 %v91, %v90
  %v95 = vpack.c.b16 %v92, %v92
  %vm98 = vcmask 293888
  %v100 = vsel %vm98, %v75, 0
  %v103 = vsel %vm98, %v76, 0
  %v106 = vsel %vm98, %v77, 0
  %v109 = vsel %vm98, %v78, 0
  %v112 = vsel %vm98, %v79, 0
  %v115 = vsel %vm98, %v80, 0
  %v118 = vsel %vm98, %v81, 0
  %v121 = vsel %vm98, %v82, 0
  %vm123 = vcmask 1041408
  %v125 = vsel %vm123, %v95, 0
  %127 = vmatprep.subr.bf16.mxu0 0
  %128 = vmatpush1.bf16.msra.mxu0 %v93
  %129 = vmatprep.subr.bf16.mxu0 0
  %130 = vmatpush1.bf16.msra.mxu0 %v94
  %131 = vmatprep.subr.bf16.mxu0 0
  %132 = vmatpush1.bf16.msra.mxu0 %v125
  %133 = vmatprep.subr.bf16.mxu0 0
  %134 = vmatpush1.bf16.msra.mxu0 0
  %135 = vmatprep.subr.bf16.mxu0 0
  %136 = vmatpush1.bf16.msra.mxu0 0
  %137 = vmatprep.subr.bf16.mxu0 0
  %138 = vmatpush1.bf16.msra.mxu0 0
  %139 = vmatprep.subr.bf16.mxu0 0
  %140 = vmatpush1.bf16.msra.mxu0 0
  %141 = vmatprep.subr.bf16.mxu0 0
  %142 = vmatpush1.bf16.msra.mxu0 0
  %143 = vmatprep.subr.bf16.mxu0 0
  %144 = vmatpush1.bf16.msra.mxu0 0
  %145 = vmatprep.subr.bf16.mxu0 0
  %146 = vmatpush1.bf16.msra.mxu0 0
  %147 = vmatprep.subr.bf16.mxu0 0
  %148 = vmatpush1.bf16.msra.mxu0 0
  %149 = vmatprep.subr.bf16.mxu0 0
  %150 = vmatpush1.bf16.msra.mxu0 0
  %151 = vmatprep.subr.bf16.mxu0 0
  %152 = vmatpush1.bf16.msra.mxu0 0
  %153 = vmatprep.subr.bf16.mxu0 0
  %154 = vmatpush1.bf16.msra.mxu0 0
  %155 = vmatprep.subr.bf16.mxu0 0
  %156 = vmatpush1.bf16.msra.mxu0 0
  %157 = vmatprep.subr.bf16.mxu0 0
  %158 = vmatpush1.bf16.msra.mxu0 0
  %159 = vmatprep.mubr.bf16.mxu0 0
  %160 = vmatmul.mubr.bf16.gmra.mrb[0].mxu0 %v100
  %v161 = vpop.f32.mrb[0].mxu0
  %v162 = vadd.f32 %v41, %v161
  %v163 = vpop.f32.mrb[0].mxu0
  %v164 = vpop.f32.mrb[0].mxu0
  %v165 = vadd.f32 %v41, %v164
  %v166 = vpop.f32.mrb[0].mxu0
  %167 = vmatprep.mubr.bf16.mxu0 0
  %168 = vmatmul.mubr.bf16.gmra.mrb[0].mxu0 %v103
  %v169 = vpop.f32.mrb[0].mxu0
  %v170 = vadd.f32 %v41, %v169
  %v171 = vpop.f32.mrb[0].mxu0
  %v172 = vpop.f32.mrb[0].mxu0
  %v173 = vadd.f32 %v41, %v172
  %v174 = vpop.f32.mrb[0].mxu0
  %175 = vmatprep.mubr.bf16.mxu0 0
  %176 = vmatmul.mubr.bf16.gmra.mrb[0].mxu0 %v106
  %v177 = vpop.f32.mrb[0].mxu0
  %v178 = vadd.f32 %v41, %v177
  %v179 = vpop.f32.mrb[0].mxu0
  %v180 = vpop.f32.mrb[0].mxu0
  %v181 = vadd.f32 %v41, %v180
  %v182 = vpop.f32.mrb[0].mxu0
  %183 = vmatprep.mubr.bf16.mxu0 0
  %184 = vmatmul.mubr.bf16.gmra.mrb[0].mxu0 %v109
  %v185 = vpop.f32.mrb[0].mxu0
  %v186 = vadd.f32 %v41, %v185
  %v187 = vpop.f32.mrb[0].mxu0
  %v188 = vpop.f32.mrb[0].mxu0
  %v189 = vadd.f32 %v41, %v188
  %v190 = vpop.f32.mrb[0].mxu0
  %191 = vmatprep.mubr.bf16.mxu0 0
  %192 = vmatmul.mubr.bf16.gmra.mrb[0].mxu0 %v112
  %v193 = vpop.f32.mrb[0].mxu0
  %v194 = vadd.f32 %v41, %v193
  %v195 = vpop.f32.mrb[0].mxu0
  %v196 = vpop.f32.mrb[0].mxu0
  %v197 = vadd.f32 %v41, %v196
  %v198 = vpop.f32.mrb[0].mxu0
  %199 = vmatprep.mubr.bf16.mxu0 0
  %200 = vmatmul.mubr.bf16.gmra.mrb[0].mxu0 %v115
  %v201 = vpop.f32.mrb[0].mxu0
  %v202 = vadd.f32 %v41, %v201
  %v203 = vpop.f32.mrb[0].mxu0
  %v204 = vpop.f32.mrb[0].mxu0
  %v205 = vadd.f32 %v41, %v204
  %v206 = vpop.f32.mrb[0].mxu0
  %207 = vmatprep.mubr.bf16.mxu0 0
  %208 = vmatmul.mubr.bf16.gmra.mrb[0].mxu0 %v118
  %v209 = vpop.f32.mrb[0].mxu0
  %v210 = vadd.f32 %v41, %v209
  %v211 = vpop.f32.mrb[0].mxu0
  %v212 = vpop.f32.mrb[0].mxu0
  %v213 = vadd.f32 %v41, %v212
  %v214 = vpop.f32.mrb[0].mxu0
  %215 = vmatprep.mubr.bf16.mxu0 0
  %216 = vmatmul.mubr.bf16.gmra.mrb[0].mxu0 %v121
  %v217 = vpop.f32.mrb[0].mxu0
  %v218 = vadd.f32 %v41, %v217
  %v219 = vpop.f32.mrb[0].mxu0
  %v220 = vpop.f32.mrb[0].mxu0
  %v221 = vadd.f32 %v41, %v220
  %v222 = vpop.f32.mrb[0].mxu0
  %223 = vdwg.mxu0
  %224 = vst [vmem:[%s3] sm:$0xff] %v162
  %225 = vst [vmem:[%s3 + $0x8] sm:$0xff] %v165
  %226 = vst [vmem:[%s3 + $0x10] sm:$0xff] %v170
  %227 = vst [vmem:[%s3 + $0x18] sm:$0xff] %v173
  %228 = vst [vmem:[%s3 + $0x20] sm:$0xff] %v178
  %229 = vst [vmem:[%s3 + $0x28] sm:$0xff] %v181
  %230 = vst [vmem:[%s3 + $0x30] sm:$0xff] %v186
  %231 = vst [vmem:[%s3 + $0x38] sm:$0xff] %v189
  %232 = vst [vmem:[%s3 + $0x40] sm:$0xff] %v194
  %233 = vst [vmem:[%s3 + $0x48] sm:$0xff] %v197
  %234 = vst [vmem:[%s3 + $0x50] sm:$0xff] %v202
  %235 = vst [vmem:[%s3 + $0x58] sm:$0xff] %v205
  %236 = vst [vmem:[%s3 + $0x60] sm:$0xff] %v210
  %237 = vst [vmem:[%s3 + $0x68] sm:$0xff] %v213
  %238 = vst [vmem:[%s3 + $0x70] sm:$0xff] %v218
  %239 = vst [vmem:[%s3 + $0x78] sm:$0xff] %v221
  // Predicated region
  $region14: #{conv_layer_forward.1} parent=0 // pred_check
    _
  $region15: #{conv_layer_forward.1} parent=0 // pred_check_branch
    %241 = sbr.rel (0) target = $region17
  $region16: #{conv_layer_forward.1} parent=0 // pred_region
    _
  $region17: #{conv_layer_forward.1} parent=0 // pred_fallthru
    _
  // Predicated region
  $region18: #{conv_layer_forward.1} parent=0 // pred_check
    _
  $region19: #{conv_layer_forward.1} parent=0 // pred_check_branch
    %243 = sbr.rel (0) target = $region21
  $region20: #{conv_layer_forward.1} parent=0 // pred_region
    _
  $region21: #{conv_layer_forward.1} parent=0 // pred_fallthru
    _

</llo_original>
